<compile_context>
chip_gen: v7x
topology: tpu7x:2x2x1
jax: 0.10.0
libtpu: 0.0.40
codegen_flags: <defaults>
</compile_context>

<pallas_src>
import jax
import jax.numpy as jnp
import numpy as np
from jax import lax
from jax.experimental import pallas as pl
from jax.experimental.pallas import tpu as pltpu

EPS = 1e-12
LANE = 128
V7X_VMEM = 64 << 20          # the binding VMEM ceiling across generations


def _round_up(x, m):
    return (x + m - 1) // m * m


def _kernel(seq_ref,                 # (Bt, S, H)   encoder block
            lnw_ref, lnb_ref,        # (Bt, 1, H)   per-sample CLN weight / bias (f32)
            w1_ref, b1_ref,          # (H, Mp), (1, Mp)
            w2_ref, b2_ref,          # (Mp, Op), (1, Op)
            out_ref):                # (Bt, S, Op)
    # ---- layer norm over the hidden (last) axis, f32 ----
    # One-pass moments: sum(x) and sum(x*x) are independent reductions, so the
    # 2 XLUs on v6e/v7x can overlap them; rsqrt is a single EUP op.
    x = seq_ref[...].astype(jnp.float32)                       # (Bt, S, H)
    mean = jnp.mean(x, axis=-1, keepdims=True)
    msq = jnp.mean(x * x, axis=-1, keepdims=True)
    var = jnp.maximum(msq - mean * mean, 0.0)                  # guard cancellation
    xn = (x - mean) * lax.rsqrt(var + EPS)
    y = xn * lnw_ref[...] + lnb_ref[...]                        # (Bt,1,H) broadcasts over S

    # ---- FC head: Linear -> ReLU -> Dropout(eval: identity) -> Linear ----
    Bt, S, H = x.shape
    y2 = y.reshape(Bt * S, H)
    h = jnp.dot(y2.astype(w1_ref.dtype), w1_ref[...],
                preferred_element_type=jnp.float32) + b1_ref[...]          # (Bt*S, Mp)
    h = jnp.maximum(h, 0.0)
    emis = jnp.dot(h.astype(w2_ref.dtype), w2_ref[...],
                   preferred_element_type=jnp.float32) + b2_ref[...]       # (Bt*S, Op)

    out_ref[...] = emis.reshape(Bt, S, out_ref.shape[-1]).astype(out_ref.dtype)


def argument_head(seq_out, trigger_index, params, *,
                  block_bs=None, weights_dtype=None, out_dtype=None):
    """seq_out: (bs, S, H) f32; trigger_index: (bs, 2) int.  Returns (bs, S, O)."""
    bs, S, H = seq_out.shape
    M = params["w1"].shape[1]
    O = params["w2"].shape[1]

    Mp = _round_up(M, LANE)                  # lane-dense intermediate (one MXU pass)
    Op = _round_up(O, LANE)                  # lane-dense output store

    f32 = jnp.float32
    wdt = f32 if weights_dtype is None else weights_dtype      # FC weights only
    odt = f32 if out_dtype is None else out_dtype              # HBM writeback dtype

    # --- hoisted: trigger gather + CLN conditioning matmuls (O(bs*H^2), f32) ---
    # Keeping this in XLA removes the four (H,H) matrices from kernel VMEM and
    # keeps the per-sample gamma/beta numerically f32 even with bf16 FC weights.
    idx = jnp.broadcast_to(trigger_index[:, :, None].astype(jnp.int32), (bs, 2, H))
    rows = jnp.take_along_axis(seq_out, idx, axis=1)           # (bs, 2, H)
    cond = rows.reshape(bs, 2 * H).astype(f32)
    gamma = params["gamma"].reshape(1, H).astype(f32)
    beta = params["beta"].reshape(1, H).astype(f32)
    ln_w = (cond @ params["ww"].astype(f32) + gamma).reshape(bs, 1, H)     # (bs,1,H)
    ln_b = (cond @ params["wb"].astype(f32) + beta).reshape(bs, 1, H)      # (bs,1,H)

    # --- pad FC parameters to lane-dense shapes (one-time layout plumbing) ---
    w1 = jnp.zeros((H, Mp), wdt).at[:, :M].set(params["w1"].astype(wdt))
    b1 = jnp.zeros((1, Mp), f32).at[:, :M].set(params["b1"].reshape(1, M).astype(f32))
    w2 = jnp.zeros((Mp, Op), wdt).at[:M, :O].set(params["w2"].astype(wdt))
    b2 = jnp.zeros((1, Op), f32).at[:, :O].set(params["b2"].reshape(1, O).astype(f32))

    # --- derive Bt against a v7x-safe VMEM budget, with an even grid >= 2 ---
    iseq = seq_out.dtype.itemsize
    iw = jnp.dtype(wdt).itemsize
    io = jnp.dtype(odt).itemsize
    per_sample = (2 * S * H * iseq               # seq block, double-buffered
                  + 2 * 2 * H * 4                # ln weight/bias blocks, double-buffered
                  + 2 * S * Op * io              # out block, double-buffered
                  + S * (3 * H + Mp + Op) * 4)   # f32 compute temporaries (x, y, h, emis)
    fixed = 2 * (H * Mp * iw + Mp * 4 + Mp * Op * iw + Op * 4)   # grid-invariant weights
    budget = int(0.40 * V7X_VMEM) - fixed
    bt_cap = max(1, budget // per_sample)
    Bt = int(min(bt_cap, bs if block_bs is None else block_bs, bs))
    if bs >= 2:
        Bt = min(Bt, -(-bs // 2))                # guarantees grid length >= 2
    Bt = max(1, Bt)
    grid_len = -(-bs // Bt)
    if grid_len > 1 and grid_len % 2 == 1:
        grid_len += 1                            # even grid so v7x 2-TC megacore balances
    bs_p = grid_len * Bt

    need = fixed + Bt * per_sample
    vmem_limit = int(min(V7X_VMEM, max(32 << 20, 2 * need)))

    # --- pad batch (padded rows are zeros; sliced off after the call) ---
    seq_p, lnw_p, lnb_p = seq_out, ln_w, ln_b
    if bs_p != bs:
        seq_p = jnp.zeros((bs_p, S, H), seq_out.dtype).at[:bs].set(seq_out)
        lnw_p = jnp.zeros((bs_p, 1, H), f32).at[:bs].set(ln_w)
        lnb_p = jnp.zeros((bs_p, 1, H), f32).at[:bs].set(ln_b)

    def full(shape):
        return pl.BlockSpec(shape, lambda g: tuple(0 for _ in shape))

    grid_spec = pltpu.PrefetchScalarGridSpec(
        num_scalar_prefetch=0,
        grid=(grid_len,),
        in_specs=[
            pl.BlockSpec((Bt, S, H), lambda g: (g, 0, 0)),   # seq block
            pl.BlockSpec((Bt, 1, H), lambda g: (g, 0, 0)),   # per-sample LN weight
            pl.BlockSpec((Bt, 1, H), lambda g: (g, 0, 0)),   # per-sample LN bias
            full((H, Mp)), full((1, Mp)),                    # fc1 weight.T, bias
            full((Mp, Op)), full((1, Op)),                   # fc2 weight.T, bias
        ],
        out_specs=pl.BlockSpec((Bt, S, Op), lambda g: (g, 0, 0)),
    )

    weight_bytes = sum(int(a.size) * a.dtype.itemsize for a in (w1, b1, w2, b2))
    flops = int(2 * bs_p * S * H * Mp + 2 * bs_p * S * Mp * Op)
    bytes_accessed = int(seq_p.size * iseq + lnw_p.size * 4 + lnb_p.size * 4
                         + bs_p * S * Op * io + weight_bytes)

    out_p = pl.pallas_call(
        _kernel,
        out_shape=jax.ShapeDtypeStruct((bs_p, S, Op), odt),
        grid_spec=grid_spec,
        compiler_params=pltpu.CompilerParams(
            dimension_semantics=("parallel",),
            vmem_limit_bytes=vmem_limit),
        cost_estimate=pl.CostEstimate(flops=flops,
                                      transcendentals=int(bs_p * S),
                                      bytes_accessed=bytes_accessed),
    )(seq_p, lnw_p, lnb_p, w1, b1, w2, b2)

    return out_p[:bs, :, :O]


def reference(seq_out, trigger_index, params):
    """Pure-JAX reference matching the PyTorch forward semantics (eval mode)."""
    bs, S, H = seq_out.shape
    idx = jnp.repeat(trigger_index[:, :, None].astype(jnp.int32), H, axis=-1)
    rows = jnp.take_along_axis(seq_out, idx, axis=1)                 # (bs, 2, H)
    cond = rows.reshape(bs, 1, 2 * H)                                # unsqueeze(1) + view
    weight = cond @ params["ww"] + params["gamma"]                   # (bs, 1, H)
    bias = cond @ params["wb"] + params["beta"]
    mean = jnp.mean(seq_out, axis=-1, keepdims=True)
    xc = seq_out - mean
    var = jnp.mean(xc ** 2, axis=-1, keepdims=True)
    xn = xc / jnp.sqrt(var + EPS)
    y = xn * weight + bias
    h = jnp.maximum(y @ params["w1"] + params["b1"], 0.0)
    return h @ params["w2"] + params["b2"]


if __name__ == "__main__":
    # Small shapes consistent with the module's forward.
    bs, S, H = 8, 8, 32          # batch, max_seq_len, bert hidden
    mid_dim = 16
    argument_num = 3
    O = argument_num * 2 + 1 + 2  # fc output dim = 9

    key = jax.random.PRNGKey(0)
    ks = jax.random.split(key, 8)

    seq_out = jax.random.normal(ks[0], (bs, S, H), dtype=jnp.float32)
    trigger_index = jax.random.randint(ks[7], (bs, 2), 0, S, dtype=jnp.int32)

    # Deterministic parameter init.  (The PyTorch reset zeros the conditional
    # dense weights; small random values are used so the conditional path
    # actually exercises compute.)
    params = {
        "ww": 0.02 * jax.random.normal(ks[1], (2 * H, H), jnp.float32),   # weight_dense.weight.T
        "wb": 0.02 * jax.random.normal(ks[2], (2 * H, H), jnp.float32),   # bias_dense.weight.T
        "gamma": jnp.ones((1, H), jnp.float32),                           # CLN weight (ones)
        "beta": jnp.zeros((1, H), jnp.float32),                           # CLN bias (zeros)
        "w1": 0.1 * jax.random.normal(ks[3], (H, mid_dim), jnp.float32),
        "b1": 0.1 * jax.random.normal(ks[4], (1, mid_dim), jnp.float32),
        "w2": 0.1 * jax.random.normal(ks[5], (mid_dim, O), jnp.float32),
        "b2": 0.1 * jax.random.normal(ks[6], (1, O), jnp.float32),
    }

    ref = reference(seq_out, trigger_index, params)

    # f32 path: auto-derived Bt=4 -> grid=(2,), even, megacore-shardable.
    out = argument_head(seq_out, trigger_index, params)
    out = jax.block_until_ready(out)
    np.testing.assert_allclose(np.asarray(out), np.asarray(ref), rtol=1e-4, atol=1e-4)
    assert out.shape == (bs, S, O)

    # Production config: bf16 FC weights + bf16 output writeback (halves weight
    # traffic and the lane-padded output bytes); CLN math stays f32.
    out_bf = argument_head(seq_out, trigger_index, params,
                           weights_dtype=jnp.bfloat16, out_dtype=jnp.bfloat16)
    out_bf = jax.block_until_ready(out_bf)
    np.testing.assert_allclose(np.asarray(out_bf.astype(jnp.float32)), np.asarray(ref),
                               rtol=5e-2, atol=5e-2)
    assert out_bf.shape == (bs, S, O)

    print("KERNEL_OK")
</pallas_src>

<mosaic_0001>
module attributes {stable_mosaic.version = 11 : i64} {
  func.func @_kernel(%arg0: i32, %arg1: memref<4x8x32xf32, #tpu.memory_space<vmem>>, %arg2: memref<4x1x32xf32, #tpu.memory_space<vmem>>, %arg3: memref<4x1x32xf32, #tpu.memory_space<vmem>>, %arg4: memref<32x128xf32, #tpu.memory_space<vmem>>, %arg5: memref<1x128xf32, #tpu.memory_space<vmem>>, %arg6: memref<128x128xf32, #tpu.memory_space<vmem>>, %arg7: memref<1x128xf32, #tpu.memory_space<vmem>>, %arg8: memref<4x8x128xf32, #tpu.memory_space<vmem>>) attributes {dimension_semantics = [#tpu.dimension_semantics<parallel>], iteration_bounds = array<i64: 2>, scalar_prefetch = 0 : i64, scratch_operands = 0 : i64, tpu.core_type = #tpu.core_type<tc>, window_params = [{transform_indices = @transform_0, window_bounds = array<i64: 4, 8, 32>}, {transform_indices = @transform_1, window_bounds = array<i64: 4, 1, 32>}, {transform_indices = @transform_2, window_bounds = array<i64: 4, 1, 32>}, {pipeline_mode = #tpu.pipeline_mode<synchronous>, transform_indices = @transform_3, window_bounds = array<i64: 32, 128>}, {pipeline_mode = #tpu.pipeline_mode<synchronous>, transform_indices = @transform_4, window_bounds = array<i64: 1, 128>}, {pipeline_mode = #tpu.pipeline_mode<synchronous>, transform_indices = @transform_5, window_bounds = array<i64: 128, 128>}, {pipeline_mode = #tpu.pipeline_mode<synchronous>, transform_indices = @transform_6, window_bounds = array<i64: 1, 128>}, {transform_indices = @transform_7, window_bounds = array<i64: 4, 8, 128>}]} {
    %c0 = arith.constant 0 : index
    %c0_0 = arith.constant 0 : index
    %c0_1 = arith.constant 0 : index
    %0 = vector.load %arg1[%c0, %c0_0, %c0_1] : memref<4x8x32xf32, #tpu.memory_space<vmem>>, vector<4x8x32xf32>
    %cst = arith.constant dense<0.000000e+00> : vector<4x8xf32>
    %1 = vector.multi_reduction <add>, %0, %cst [2] : vector<4x8x32xf32> to vector<4x8xf32>
    %2 = vector.shape_cast %1 : vector<4x8xf32> to vector<4x8x1xf32>
    %cst_2 = arith.constant 3.200000e+01 : f32
    %3 = vector.broadcast %cst_2 : f32 to vector<4x8x1xf32>
    %4 = arith.divf %2, %3 : vector<4x8x1xf32>
    %5 = arith.mulf %0, %0 : vector<4x8x32xf32>
    %cst_3 = arith.constant dense<0.000000e+00> : vector<4x8xf32>
    %6 = vector.multi_reduction <add>, %5, %cst_3 [2] : vector<4x8x32xf32> to vector<4x8xf32>
    %7 = vector.shape_cast %6 : vector<4x8xf32> to vector<4x8x1xf32>
    %cst_4 = arith.constant 3.200000e+01 : f32
    %8 = vector.broadcast %cst_4 : f32 to vector<4x8x1xf32>
    %9 = arith.divf %7, %8 : vector<4x8x1xf32>
    %10 = arith.mulf %4, %4 : vector<4x8x1xf32>
    %11 = arith.subf %9, %10 : vector<4x8x1xf32>
    %cst_5 = arith.constant 0.000000e+00 : f32
    %12 = vector.broadcast %cst_5 : f32 to vector<4x8x1xf32>
    %13 = arith.maximumf %11, %12 : vector<4x8x1xf32>
    %14 = vector.broadcast %4 : vector<4x8x1xf32> to vector<4x8x32xf32>
    %15 = arith.subf %0, %14 : vector<4x8x32xf32>
    %cst_6 = arith.constant 9.99999996E-13 : f32
    %16 = vector.broadcast %cst_6 : f32 to vector<4x8x1xf32>
    %17 = arith.addf %13, %16 : vector<4x8x1xf32>
    %18 = math.rsqrt %17 : vector<4x8x1xf32>
    %19 = vector.broadcast %18 : vector<4x8x1xf32> to vector<4x8x32xf32>
    %20 = arith.mulf %15, %19 : vector<4x8x32xf32>
    %c0_7 = arith.constant 0 : index
    %c0_8 = arith.constant 0 : index
    %c0_9 = arith.constant 0 : index
    %21 = vector.load %arg2[%c0_7, %c0_8, %c0_9] : memref<4x1x32xf32, #tpu.memory_space<vmem>>, vector<4x1x32xf32>
    %22 = vector.broadcast %21 : vector<4x1x32xf32> to vector<4x8x32xf32>
    %23 = arith.mulf %20, %22 : vector<4x8x32xf32>
    %c0_10 = arith.constant 0 : index
    %c0_11 = arith.constant 0 : index
    %c0_12 = arith.constant 0 : index
    %24 = vector.load %arg3[%c0_10, %c0_11, %c0_12] : memref<4x1x32xf32, #tpu.memory_space<vmem>>, vector<4x1x32xf32>
    %25 = vector.broadcast %24 : vector<4x1x32xf32> to vector<4x8x32xf32>
    %26 = arith.addf %23, %25 : vector<4x8x32xf32>
    %27 = vector.shape_cast %26 : vector<4x8x32xf32> to vector<32x32xf32>
    %c0_13 = arith.constant 0 : index
    %c0_14 = arith.constant 0 : index
    %28 = vector.load %arg4[%c0_13, %c0_14] : memref<32x128xf32, #tpu.memory_space<vmem>>, vector<32x128xf32>
    %cst_15 = arith.constant dense<0.000000e+00> : vector<32x128xf32>
    %29 = tpu.matmul %27, %28, %cst_15 {dimension_numbers = #tpu.dot_dimension_numbers<[1], [0], [0], [1], [0, 0, 1, 1], [], []>} : vector<32x32xf32>, vector<32x128xf32>, vector<32x128xf32> -> vector<32x128xf32>
    %c0_16 = arith.constant 0 : index
    %c0_17 = arith.constant 0 : index
    %30 = vector.load %arg5[%c0_16, %c0_17] : memref<1x128xf32, #tpu.memory_space<vmem>>, vector<1x128xf32>
    %31 = vector.broadcast %30 : vector<1x128xf32> to vector<32x128xf32>
    %32 = arith.addf %29, %31 : vector<32x128xf32>
    %cst_18 = arith.constant 0.000000e+00 : f32
    %33 = vector.broadcast %cst_18 : f32 to vector<32x128xf32>
    %34 = arith.maximumf %32, %33 : vector<32x128xf32>
    %c0_19 = arith.constant 0 : index
    %c0_20 = arith.constant 0 : index
    %35 = vector.load %arg6[%c0_19, %c0_20] : memref<128x128xf32, #tpu.memory_space<vmem>>, vector<128x128xf32>
    %cst_21 = arith.constant dense<0.000000e+00> : vector<32x128xf32>
    %36 = tpu.matmul %34, %35, %cst_21 {dimension_numbers = #tpu.dot_dimension_numbers<[1], [0], [0], [1], [0, 0, 1, 1], [], []>} : vector<32x128xf32>, vector<128x128xf32>, vector<32x128xf32> -> vector<32x128xf32>
    %c0_22 = arith.constant 0 : index
    %c0_23 = arith.constant 0 : index
    %37 = vector.load %arg7[%c0_22, %c0_23] : memref<1x128xf32, #tpu.memory_space<vmem>>, vector<1x128xf32>
    %38 = vector.broadcast %37 : vector<1x128xf32> to vector<32x128xf32>
    %39 = arith.addf %36, %38 : vector<32x128xf32>
    %40 = vector.shape_cast %39 : vector<32x128xf32> to vector<4x8x128xf32>
    %c0_24 = arith.constant 0 : index
    %c0_25 = arith.constant 0 : index
    %c0_26 = arith.constant 0 : index
    %41 = vector.load %arg8[%c0_24, %c0_25, %c0_26] : memref<4x8x128xf32, #tpu.memory_space<vmem>>, vector<4x8x128xf32>
    tpu.vector_store %arg8[%c0_24, %c0_25, %c0_26], %40 {strides = array<i32>} : memref<4x8x128xf32, #tpu.memory_space<vmem>>, vector<4x8x128xf32>,
    return
  }
  func.func @transform_0(%arg0: i32) -> (i32, i32, i32) {
    %c0_i32 = arith.constant 0 : i32
    %c0_i32_0 = arith.constant 0 : i32
    %c0_i32_1 = arith.constant 0 : i32
    return %arg0, %c0_i32, %c0_i32_0 : i32, i32, i32
  }
  func.func @transform_1(%arg0: i32) -> (i32, i32, i32) {
    %c0_i32 = arith.constant 0 : i32
    %c0_i32_0 = arith.constant 0 : i32
    %c0_i32_1 = arith.constant 0 : i32
    return %arg0, %c0_i32, %c0_i32_0 : i32, i32, i32
  }
  func.func @transform_2(%arg0: i32) -> (i32, i32, i32) {
    %c0_i32 = arith.constant 0 : i32
    %c0_i32_0 = arith.constant 0 : i32
    %c0_i32_1 = arith.constant 0 : i32
    return %arg0, %c0_i32, %c0_i32_0 : i32, i32, i32
  }
  func.func @transform_3(%arg0: i32) -> (i32, i32) {
    %c0_i32 = arith.constant 0 : i32
    %c0_i32_0 = arith.constant 0 : i32
    %c0_i32_1 = arith.constant 0 : i32
    return %c0_i32, %c0_i32_0 : i32, i32
  }
  func.func @transform_4(%arg0: i32) -> (i32, i32) {
    %c0_i32 = arith.constant 0 : i32
    %c0_i32_0 = arith.constant 0 : i32
    %c0_i32_1 = arith.constant 0 : i32
    return %c0_i32, %c0_i32_0 : i32, i32
  }
  func.func @transform_5(%arg0: i32) -> (i32, i32) {
    %c0_i32 = arith.constant 0 : i32
    %c0_i32_0 = arith.constant 0 : i32
    %c0_i32_1 = arith.constant 0 : i32
    return %c0_i32, %c0_i32_0 : i32, i32
  }
  func.func @transform_6(%arg0: i32) -> (i32, i32) {
    %c0_i32 = arith.constant 0 : i32
    %c0_i32_0 = arith.constant 0 : i32
    %c0_i32_1 = arith.constant 0 : i32
    return %c0_i32, %c0_i32_0 : i32, i32
  }
  func.func @transform_7(%arg0: i32) -> (i32, i32, i32) {
    %c0_i32 = arith.constant 0 : i32
    %c0_i32_0 = arith.constant 0 : i32
    %c0_i32_1 = arith.constant 0 : i32
    return %arg0, %c0_i32, %c0_i32_0 : i32, i32, i32
  }
}

</mosaic_0001>

<llo_original>
// kernel: tpu_custom_call.1
$region0: #{tpu_custom_call.1}
  #allocation0 [shape = 'u32[]', space=smem, size = 0x4, offset = 0x4, fixed_abs, tag = 'smem constant byte address 0x4 - core index']
  #allocation1 [shape = 'u32[144,128]{1,0:T(1,128)}', space=vmem, size = 0x12000, scoped, tag = 'internal scratch']
  %s0 = inlined_call_operand.hbm [shape: f32[8,8,32], index: 0, kind: input, shape index: {}]
  %s1 = inlined_call_operand.hbm [shape: f32[8,1,32], index: 1, kind: input, shape index: {}]
  %s2 = inlined_call_operand.hbm [shape: f32[8,1,32], index: 2, kind: input, shape index: {}]
  %s3 = inlined_call_operand.hbm [shape: f32[32,128], index: 3, kind: input, shape index: {}]
  %s4 = inlined_call_operand.vmem [shape: f32[1,128], index: 4, kind: input, shape index: {}]
  %s5 = inlined_call_operand.hbm [shape: f32[128,128], index: 5, kind: input, shape index: {}]
  %s6 = inlined_call_operand.vmem [shape: f32[1,128], index: 6, kind: input, shape index: {}]
  %s7 = inlined_call_operand.hbm [shape: f32[8,8,128], index: 7, kind: output, shape index: {}]
  %s8 = sld [smem:[#allocation0]]
  $region81: #{tpu_custom_call.1} parent=0
    _
  %s10 = ssub.s32 1, %s8
  %s11 = scalar_select 0, %s10, %s8
  $region1: #{tpu_custom_call.1} parent=0
    #allocation2 [shape = 'u8[32768]{0}', space=vmem, size = 0x8000, scoped, tag = 'input window, operand 0']
    #allocation3 [shape = 's32[2]{0}', space=sflag, size = 0x8, scoped, tag = 'scoped memory for tpu_custom_call.1']
    #allocation4 [shape = 's32[2]{0}', space=sflag, size = 0x8, scoped, tag = 'scoped memory for tpu_custom_call.1']
    #allocation5 [shape = 'u8[4096]{0}', space=vmem, size = 0x1000, scoped, tag = 'input window, operand 1']
    #allocation6 [shape = 's32[2]{0}', space=sflag, size = 0x8, scoped, tag = 'scoped memory for tpu_custom_call.1']
    #allocation7 [shape = 'u8[4096]{0}', space=vmem, size = 0x1000, scoped, tag = 'input window, operand 2']
    #allocation8 [shape = 'u8[16384]{0}', space=vmem, size = 0x4000, scoped, tag = 'input window, operand 3, single buffered']
    #allocation9 [shape = 's32[1]{0}', space=sflag, size = 0x4, scoped, tag = 'scoped memory for tpu_custom_call.1']
    #allocation10 [shape = 'u8[65536]{0}', space=vmem, size = 0x10000, scoped, tag = 'input window, operand 5, single buffered']
    #allocation11 [shape = 'u8[32768]{0}', space=vmem, size = 0x8000, scoped, tag = 'output window, operand 0']
    %12 = vsyncpa [#allocation3], 0
    %s13 = scalar_lea.sflag [#allocation3], 1
    %14 = vsyncpa %s13, 0
    %15 = vsyncpa [#allocation6], 0
    %s16 = scalar_lea.sflag [#allocation6], 1
    %17 = vsyncpa %s16, 0
    %18 = vsyncpa [#allocation9], 0
    %19 = vsyncpa [#allocation4], 0
    %s20 = scalar_lea.sflag [#allocation4], 1
    %21 = vsyncpa %s20, 0
    loop: start=0, step=1, limit=4
    $region2: #{tpu_custom_call.1} parent=1 // loop_pre_header
      _
    $region3: #{tpu_custom_call.1} parent=1 // loop_header
      %s23 = sphi 0, %s27
      %p24 = scmp.ge.s32.totalorder %s23, 4
      %s33 = sphi 0, %s35
      %s36 = sphi 0, %s33
      %s37 = sphi 0, %s36
      %s53 = sphi 0, %s37
      %s59 = sphi 0, %s61
      %s62 = sphi 0, %s59
      %s63 = sphi 0, %s62
      %s79 = sphi 0, %s63
      %s85 = sphi 0, %s87
      %s88 = sphi 0, %s85
      %s89 = sphi 0, %s88
      %s105 = sphi 0, %s89
      %s109 = sphi 0, %s109
      %s111 = sphi 0, %s109
      %s112 = sphi 0, %s111
      %s126 = sphi 0, %s112
      %s130 = sphi 0, %s130
      %s132 = sphi 0, %s130
      %s133 = sphi 0, %s132
      %s147 = sphi 0, %s133
      %s151 = sphi 0, %s151
      %s153 = sphi 0, %s151
      %s154 = sphi 0, %s153
      %s168 = sphi 0, %s154
      %s172 = sphi 0, %s172
      %s174 = sphi 0, %s172
      %s175 = sphi 0, %s174
      %s189 = sphi 0, %s175
      %s195 = sphi 0, %s197
      %s198 = sphi 0, %s195
      %s199 = sphi 0, %s198
      %s215 = sphi 0, %s199
    $region4: #{tpu_custom_call.1} parent=1 // loop_header_branch
      %26 = sbr.rel (%p24) target = $region8
    $region5: #{tpu_custom_call.1} parent=1 // loop_body
      %s28 = ssub.s32 %s23, 1
      %s29 = ssub.s32 %s23, 2
      %s30 = sadd.s32 %s23, 1
      %s31 = ssub.s32 %s23, %s30
      %p32 = scmp.eq.s32.totalorder %s31, 0
      %s34 = sadd.s32 %s33, 1
      %s35 = scalar_select %p32, %s33, %s34
      %p38 = pneg %p32
      %p39 = scmp.eq.s32.totalorder %s23, 1
      %p40 = por %p38, %p39
      %p41 = scmp.ne.s32.totalorder %s33, %s36
      %p42 = scmp.eq.s32.totalorder %s23, 0
      %p43 = por %p41, %p42
      %p44 = scmp.ne.s32.totalorder %s33, %s36
      %p45 = scmp.eq.s32.totalorder %s28, 1
      %p46 = por %p44, %p45
      %p47 = scmp.ne.s32.totalorder %s36, %s37
      %p48 = scmp.eq.s32.totalorder %s28, 0
      %p49 = por %p47, %p48
      %p50 = scmp.ne.s32.totalorder %s36, %s37
      %p51 = scmp.eq.s32.totalorder %s29, 1
      %p52 = por %p50, %p51
      %p54 = scmp.ne.s32.totalorder %s37, %s53
      %p55 = scmp.eq.s32.totalorder %s29, 0
      %p56 = por %p54, %p55
      %s57 = ssub.s32 %s23, %s30
      %p58 = scmp.eq.s32.totalorder %s57, 0
      %s60 = sadd.s32 %s59, 1
      %s61 = scalar_select %p58, %s59, %s60
      %p64 = pneg %p58
      %p65 = scmp.eq.s32.totalorder %s23, 1
      %p66 = por %p64, %p65
      %p67 = scmp.ne.s32.totalorder %s59, %s62
      %p68 = scmp.eq.s32.totalorder %s23, 0
      %p69 = por %p67, %p68
      %p70 = scmp.ne.s32.totalorder %s59, %s62
      %p71 = scmp.eq.s32.totalorder %s28, 1
      %p72 = por %p70, %p71
      %p73 = scmp.ne.s32.totalorder %s62, %s63
      %p74 = scmp.eq.s32.totalorder %s28, 0
      %p75 = por %p73, %p74
      %p76 = scmp.ne.s32.totalorder %s62, %s63
      %p77 = scmp.eq.s32.totalorder %s29, 1
      %p78 = por %p76, %p77
      %p80 = scmp.ne.s32.totalorder %s63, %s79
      %p81 = scmp.eq.s32.totalorder %s29, 0
      %p82 = por %p80, %p81
      %s83 = ssub.s32 %s23, %s30
      %p84 = scmp.eq.s32.totalorder %s83, 0
      %s86 = sadd.s32 %s85, 1
      %s87 = scalar_select %p84, %s85, %s86
      %p90 = pneg %p84
      %p91 = scmp.eq.s32.totalorder %s23, 1
      %p92 = por %p90, %p91
      %p93 = scmp.ne.s32.totalorder %s85, %s88
      %p94 = scmp.eq.s32.totalorder %s23, 0
      %p95 = por %p93, %p94
      %p96 = scmp.ne.s32.totalorder %s85, %s88
      %p97 = scmp.eq.s32.totalorder %s28, 1
      %p98 = por %p96, %p97
      %p99 = scmp.ne.s32.totalorder %s88, %s89
      %p100 = scmp.eq.s32.totalorder %s28, 0
      %p101 = por %p99, %p100
      %p102 = scmp.ne.s32.totalorder %s88, %s89
      %p103 = scmp.eq.s32.totalorder %s29, 1
      %p104 = por %p102, %p103
      %p106 = scmp.ne.s32.totalorder %s89, %s105
      %p107 = scmp.eq.s32.totalorder %s29, 0
      %p108 = por %p106, %p107
      %s110 = sadd.s32 %s109, 1
      %p113 = scmp.eq.s32.totalorder %s23, 1
      %p114 = scmp.ne.s32.totalorder %s109, %s111
      %p115 = scmp.eq.s32.totalorder %s23, 0
      %p116 = por %p114, %p115
      %p117 = scmp.ne.s32.totalorder %s109, %s111
      %p118 = scmp.eq.s32.totalorder %s28, 1
      %p119 = por %p117, %p118
      %p120 = scmp.ne.s32.totalorder %s111, %s112
      %p121 = scmp.eq.s32.totalorder %s28, 0
      %p122 = por %p120, %p121
      %p123 = scmp.ne.s32.totalorder %s111, %s112
      %p124 = scmp.eq.s32.totalorder %s29, 1
      %p125 = por %p123, %p124
      %p127 = scmp.ne.s32.totalorder %s112, %s126
      %p128 = scmp.eq.s32.totalorder %s29, 0
      %p129 = por %p127, %p128
      %s131 = sadd.s32 %s130, 1
      %p134 = scmp.eq.s32.totalorder %s23, 1
      %p135 = scmp.ne.s32.totalorder %s130, %s132
      %p136 = scmp.eq.s32.totalorder %s23, 0
      %p137 = por %p135, %p136
      %p138 = scmp.ne.s32.totalorder %s130, %s132
      %p139 = scmp.eq.s32.totalorder %s28, 1
      %p140 = por %p138, %p139
      %p141 = scmp.ne.s32.totalorder %s132, %s133
      %p142 = scmp.eq.s32.totalorder %s28, 0
      %p143 = por %p141, %p142
      %p144 = scmp.ne.s32.totalorder %s132, %s133
      %p145 = scmp.eq.s32.totalorder %s29, 1
      %p146 = por %p144, %p145
      %p148 = scmp.ne.s32.totalorder %s133, %s147
      %p149 = scmp.eq.s32.totalorder %s29, 0
      %p150 = por %p148, %p149
      %s152 = sadd.s32 %s151, 1
      %p155 = scmp.eq.s32.totalorder %s23, 1
      %p156 = scmp.ne.s32.totalorder %s151, %s153
      %p157 = scmp.eq.s32.totalorder %s23, 0
      %p158 = por %p156, %p157
      %p159 = scmp.ne.s32.totalorder %s151, %s153
      %p160 = scmp.eq.s32.totalorder %s28, 1
      %p161 = por %p159, %p160
      %p162 = scmp.ne.s32.totalorder %s153, %s154
      %p163 = scmp.eq.s32.totalorder %s28, 0
      %p164 = por %p162, %p163
      %p165 = scmp.ne.s32.totalorder %s153, %s154
      %p166 = scmp.eq.s32.totalorder %s29, 1
      %p167 = por %p165, %p166
      %p169 = scmp.ne.s32.totalorder %s154, %s168
      %p170 = scmp.eq.s32.totalorder %s29, 0
      %p171 = por %p169, %p170
      %s173 = sadd.s32 %s172, 1
      %p176 = scmp.eq.s32.totalorder %s23, 1
      %p177 = scmp.ne.s32.totalorder %s172, %s174
      %p178 = scmp.eq.s32.totalorder %s23, 0
      %p179 = por %p177, %p178
      %p180 = scmp.ne.s32.totalorder %s172, %s174
      %p181 = scmp.eq.s32.totalorder %s28, 1
      %p182 = por %p180, %p181
      %p183 = scmp.ne.s32.totalorder %s174, %s175
      %p184 = scmp.eq.s32.totalorder %s28, 0
      %p185 = por %p183, %p184
      %p186 = scmp.ne.s32.totalorder %s174, %s175
      %p187 = scmp.eq.s32.totalorder %s29, 1
      %p188 = por %p186, %p187
      %p190 = scmp.ne.s32.totalorder %s175, %s189
      %p191 = scmp.eq.s32.totalorder %s29, 0
      %p192 = por %p190, %p191
      %s193 = ssub.s32 %s23, %s30
      %p194 = scmp.eq.s32.totalorder %s193, 0
      %s196 = sadd.s32 %s195, 1
      %s197 = scalar_select %p194, %s195, %s196
      %p200 = pneg %p194
      %p201 = scmp.eq.s32.totalorder %s23, 1
      %p202 = por %p200, %p201
      %p203 = scmp.ne.s32.totalorder %s195, %s198
      %p204 = scmp.eq.s32.totalorder %s23, 0
      %p205 = por %p203, %p204
      %p206 = scmp.ne.s32.totalorder %s195, %s198
      %p207 = scmp.eq.s32.totalorder %s28, 1
      %p208 = por %p206, %p207
      %p209 = scmp.ne.s32.totalorder %s198, %s199
      %p210 = scmp.eq.s32.totalorder %s28, 0
      %p211 = por %p209, %p210
      %p212 = scmp.ne.s32.totalorder %s198, %s199
      %p213 = scmp.eq.s32.totalorder %s29, 1
      %p214 = por %p212, %p213
      %p216 = scmp.ne.s32.totalorder %s199, %s215
      %p217 = scmp.eq.s32.totalorder %s29, 0
      %p218 = por %p216, %p217
      %p219 = scmp.le.s32.totalorder 1, %s23
      %p220 = scmp.lt.s32.totalorder %s23, 3
      %p221 = pnand %p219, %p220
      %p222 = pneg %p221
      // Predicated region
      $region9: #{tpu_custom_call.1} parent=5 // pred_check
        _
      $region10: #{tpu_custom_call.1} parent=5 // pred_check_branch
        %224 = sbr.rel (%p221) target = $region12
      $region11: #{tpu_custom_call.1} parent=5 // pred_region
        %s225 = ssub.s32 %s23, 1
        // Predicated region
        $region13: #{tpu_custom_call.1} parent=11 // pred_check
          %p226 = pneg %p122
        $region14: #{tpu_custom_call.1} parent=11 // pred_check_branch
          %228 = sbr.rel (%p226) target = $region16
        $region15: #{tpu_custom_call.1} parent=11 // pred_region
          %s230 = ssub.s32 512, 512
          %231 = vsyncadd [#allocation9], %s230
          %s232 = sshll.u32 [#allocation8], 4
          %s233 = int_to_ptr.vmem [resolvable:$true] %s232
          %238 = dma.hbm_to_vmem [thread:$0]  %s3, 512, %s233, [#allocation9], 128, 128, 8
        $region16: #{tpu_custom_call.1} parent=11 // pred_fallthru
          _
        // Predicated region
        $region17: #{tpu_custom_call.1} parent=11 // pred_check
          %p239 = pneg %p143
        $region18: #{tpu_custom_call.1} parent=11 // pred_check_branch
          %241 = sbr.rel (%p239) target = $region20
        $region19: #{tpu_custom_call.1} parent=11 // pred_region
          _
        $region20: #{tpu_custom_call.1} parent=11 // pred_fallthru
          _
        // Predicated region
        $region21: #{tpu_custom_call.1} parent=11 // pred_check
          %p242 = pneg %p164
        $region22: #{tpu_custom_call.1} parent=11 // pred_check_branch
          %244 = sbr.rel (%p242) target = $region24
        $region23: #{tpu_custom_call.1} parent=11 // pred_region
          %s246 = ssub.s32 2048, 2048
          %247 = vsyncadd [#allocation9], %s246
          %s248 = sshll.u32 [#allocation10], 4
          %s249 = int_to_ptr.vmem [resolvable:$true] %s248
          %254 = dma.hbm_to_vmem [thread:$0]  %s5, 2048, %s249, [#allocation9], 128, 128, 8
        $region24: #{tpu_custom_call.1} parent=11 // pred_fallthru
          _
        // Predicated region
        $region25: #{tpu_custom_call.1} parent=11 // pred_check
          %p255 = pneg %p185
        $region26: #{tpu_custom_call.1} parent=11 // pred_check_branch
          %257 = sbr.rel (%p255) target = $region28
        $region27: #{tpu_custom_call.1} parent=11 // pred_region
          _
        $region28: #{tpu_custom_call.1} parent=11 // pred_fallthru
          _
      $region12: #{tpu_custom_call.1} parent=5 // pred_fallthru
        _
      %p258 = scmp.lt.s32.totalorder %s23, 2
      // Predicated region
      $region29: #{tpu_custom_call.1} parent=5 // pred_check
        %p259 = pneg %p258
      $region30: #{tpu_custom_call.1} parent=5 // pred_check_branch
        %261 = sbr.rel (%p259) target = $region32
      $region31: #{tpu_custom_call.1} parent=5 // pred_region
        // Predicated region
        $region33: #{tpu_custom_call.1} parent=31 // pred_check
          %p262 = pneg %p43
        $region34: #{tpu_custom_call.1} parent=31 // pred_check_branch
          %264 = sbr.rel (%p262) target = $region36
        $region35: #{tpu_custom_call.1} parent=31 // pred_region
          %s265 = sand.u32 %s33, 1
          %s266 = scalar_lea.sflag [#allocation3], %s265
          %s267 = sand.u32 %s33, 1
          %s268 = smul.addr %s267, 32
          %s269 = scalar_lea.vmem [#allocation2], %s268
          %s270 = smul.u32 4, %s23
          %s272 = ssub.s32 512, 512
          %273 = vsyncadd %s266, %s272
          %s274 = smul.addr %s270, 128
          %s275 = scalar_lea.hbm %s0, %s274
          %s276 = sshll.u32 %s269, 4
          %s277 = int_to_ptr.vmem [resolvable:$true] %s276
          %282 = dma.hbm_to_vmem [thread:$0]  %s275, 512, %s277, %s266, 128, 128, 8
        $region36: #{tpu_custom_call.1} parent=31 // pred_fallthru
          _
        // Predicated region
        $region37: #{tpu_custom_call.1} parent=31 // pred_check
          %p283 = pneg %p69
        $region38: #{tpu_custom_call.1} parent=31 // pred_check_branch
          %285 = sbr.rel (%p283) target = $region40
        $region39: #{tpu_custom_call.1} parent=31 // pred_region
          %s286 = sand.u32 %s23, 1
          %s287 = scalar_lea.sflag [#allocation6], %s286
          %s288 = sand.u32 %s59, 1
          %s289 = smul.addr %s288, 4
          %s290 = scalar_lea.vmem [#allocation5], %s289
          %s291 = smul.u32 4, %s23
          %s293 = ssub.s32 64, 64
          %294 = vsyncadd %s287, %s293
          %s295 = smul.addr %s291, 16
          %s296 = scalar_lea.hbm %s1, %s295
          %s297 = sshll.u32 %s290, 4
          %s298 = int_to_ptr.vmem [resolvable:$true] %s297
          %303 = dma.hbm_to_vmem [thread:$0]  %s296, 64, %s298, %s287, 16, 16, 1
        $region40: #{tpu_custom_call.1} parent=31 // pred_fallthru
          _
        // Predicated region
        $region41: #{tpu_custom_call.1} parent=31 // pred_check
          %p304 = pneg %p95
        $region42: #{tpu_custom_call.1} parent=31 // pred_check_branch
          %306 = sbr.rel (%p304) target = $region44
        $region43: #{tpu_custom_call.1} parent=31 // pred_region
          %s307 = sand.u32 %s23, 1
          %s308 = scalar_lea.sflag [#allocation6], %s307
          %s309 = sand.u32 %s85, 1
          %s310 = smul.addr %s309, 4
          %s311 = scalar_lea.vmem [#allocation7], %s310
          %s312 = smul.u32 4, %s23
          %s314 = ssub.s32 64, 64
          %315 = vsyncadd %s308, %s314
          %s316 = smul.addr %s312, 16
          %s317 = scalar_lea.hbm %s2, %s316
          %s318 = sshll.u32 %s311, 4
          %s319 = int_to_ptr.vmem [resolvable:$true] %s318
          %324 = dma.hbm_to_vmem [thread:$0]  %s317, 64, %s319, %s308, 16, 16, 1
        $region44: #{tpu_custom_call.1} parent=31 // pred_fallthru
          _
      $region32: #{tpu_custom_call.1} parent=5 // pred_fallthru
        _
      %p325 = scmp.le.s32.totalorder 1, %s23
      %p326 = scmp.lt.s32.totalorder %s23, 3
      %p327 = pnand %p325, %p326
      %p328 = pneg %p327
      // Predicated region
      $region45: #{tpu_custom_call.1} parent=5 // pred_check
        _
      $region46: #{tpu_custom_call.1} parent=5 // pred_check_branch
        %330 = sbr.rel (%p327) target = $region48
      $region47: #{tpu_custom_call.1} parent=5 // pred_region
        %s331 = ssub.s32 %s23, 1
        %s332 = sand.u32 %s36, 1
        %s333 = scalar_lea.sflag [#allocation3], %s332
        %s334 = sand.u32 %s36, 1
        %s335 = smul.addr %s334, 32
        %s336 = scalar_lea.vmem [#allocation2], %s335
        // Predicated region
        $region49: #{tpu_custom_call.1} parent=47 // pred_check
          %p337 = pneg %p49
        $region50: #{tpu_custom_call.1} parent=47 // pred_check_branch
          %339 = sbr.rel (%p337) target = $region52
        $region51: #{tpu_custom_call.1} parent=47 // pred_region
          %340 = dma.done %s333, 512
        $region52: #{tpu_custom_call.1} parent=47 // pred_fallthru
          _
        %s341 = sand.u32 %s28, 1
        %s342 = scalar_lea.sflag [#allocation6], %s341
        %s343 = sand.u32 %s62, 1
        %s344 = smul.addr %s343, 4
        %s345 = scalar_lea.vmem [#allocation5], %s344
        // Predicated region
        $region53: #{tpu_custom_call.1} parent=47 // pred_check
          %p346 = pneg %p75
        $region54: #{tpu_custom_call.1} parent=47 // pred_check_branch
          %348 = sbr.rel (%p346) target = $region56
        $region55: #{tpu_custom_call.1} parent=47 // pred_region
          %349 = dma.done %s342, 64
        $region56: #{tpu_custom_call.1} parent=47 // pred_fallthru
          _
        %s350 = sand.u32 %s28, 1
        %s351 = scalar_lea.sflag [#allocation6], %s350
        %s352 = sand.u32 %s88, 1
        %s353 = smul.addr %s352, 4
        %s354 = scalar_lea.vmem [#allocation7], %s353
        // Predicated region
        $region57: #{tpu_custom_call.1} parent=47 // pred_check
          %p355 = pneg %p101
        $region58: #{tpu_custom_call.1} parent=47 // pred_check_branch
          %357 = sbr.rel (%p355) target = $region60
        $region59: #{tpu_custom_call.1} parent=47 // pred_region
          %358 = dma.done %s351, 64
        $region60: #{tpu_custom_call.1} parent=47 // pred_fallthru
          _
        // Predicated region
        $region61: #{tpu_custom_call.1} parent=47 // pred_check
          %p359 = pneg %p122
        $region62: #{tpu_custom_call.1} parent=47 // pred_check_branch
          %361 = sbr.rel (%p359) target = $region64
        $region63: #{tpu_custom_call.1} parent=47 // pred_region
          %362 = dma.done [#allocation9], 512
        $region64: #{tpu_custom_call.1} parent=47 // pred_fallthru
          _
        // Predicated region
        $region65: #{tpu_custom_call.1} parent=47 // pred_check
          %p363 = pneg %p164
        $region66: #{tpu_custom_call.1} parent=47 // pred_check_branch
          %365 = sbr.rel (%p363) target = $region68
        $region67: #{tpu_custom_call.1} parent=47 // pred_region
          %366 = dma.done [#allocation9], 2048
        $region68: #{tpu_custom_call.1} parent=47 // pred_fallthru
          _
        %s367 = sand.u32 %s36, 1
        %s368 = scalar_lea.sflag [#allocation3], %s367
        %s369 = sand.u32 %s36, 1
        %s370 = smul.addr %s369, 32
        %s371 = scalar_lea.vmem [#allocation2], %s370
        %p372 = pneg %p49
        %p373 = pneg %p46
        %s374 = sand.u32 %s28, 1
        %s375 = scalar_lea.sflag [#allocation6], %s374
        %s376 = sand.u32 %s62, 1
        %s377 = smul.addr %s376, 4
        %s378 = scalar_lea.vmem [#allocation5], %s377
        %p379 = pneg %p75
        %p380 = pneg %p72
        %s381 = sand.u32 %s28, 1
        %s382 = scalar_lea.sflag [#allocation6], %s381
        %s383 = sand.u32 %s88, 1
        %s384 = smul.addr %s383, 4
        %s385 = scalar_lea.vmem [#allocation7], %s384
        %p386 = pneg %p101
        %p387 = pneg %p98
        %p388 = pneg %p122
        %p389 = pneg %p119
        %p390 = pneg %p143
        %p391 = pneg %p140
        %p392 = pneg %p164
        %p393 = pneg %p161
        %p394 = pneg %p185
        %p395 = pneg %p182
        %p396 = pneg %p211
        %p397 = pneg %p208
        %s398 = sand.u32 %s198, 1
        %s399 = scalar_lea.sflag [#allocation4], %s398
        %s400 = sand.u32 %s198, 1
        %s401 = smul.addr %s400, 32
        %s402 = scalar_lea.vmem [#allocation11], %s401
        %s403 = smul.u32 4, %s28
        %s404 = smul.u32 4, %s28
        %s405 = smul.u32 4, %s28
        %s406 = smul.u32 4, %s28
        %v407 = vld [vmem:[%s336] sm:$0xff]
        %v408 = vld [vmem:[%s336 + $0x8] sm:$0xff]
        %v409 = vld [vmem:[%s336 + $0x10] sm:$0xff]
        %v410 = vld [vmem:[%s336 + $0x18] sm:$0xff]
        %vm411 = vcmask 261120
        %v412 = vsel %vm411, %v407, 0.0
        %413 = vadd.xlane.f32.xlu0 %v412
        %v414 = vpop.xlane.xlu0 %413
        %v415 = vsel %vm411, %v408, 0.0
        %416 = vadd.xlane.f32.xlu0 %v415
        %v417 = vpop.xlane.xlu0 %416
        %v418 = vsel %vm411, %v409, 0.0
        %419 = vadd.xlane.f32.xlu0 %v418
        %v420 = vpop.xlane.xlu0 %419
        %v421 = vsel %vm411, %v410, 0.0
        %422 = vadd.xlane.f32.xlu0 %v421
        %v423 = vpop.xlane.xlu0 %422
        %v424 = vrcp.pop 32.0
        %v425 = vmul.f32 %v414, %v424
        %v426 = vmul.f32 %v417, %v424
        %v427 = vmul.f32 %v420, %v424
        %v428 = vmul.f32 %v423, %v424
        %v429 = vmul.f32 %v407, %v407
        %v430 = vmul.f32 %v408, %v408
        %v431 = vmul.f32 %v409, %v409
        %v432 = vmul.f32 %v410, %v410
        %v433 = vsel %vm411, %v429, 0.0
        %434 = vadd.xlane.f32.xlu0 %v433
        %v435 = vpop.xlane.xlu0 %434
        %v436 = vsel %vm411, %v430, 0.0
        %437 = vadd.xlane.f32.xlu0 %v436
        %v438 = vpop.xlane.xlu0 %437
        %v439 = vsel %vm411, %v431, 0.0
        %440 = vadd.xlane.f32.xlu0 %v439
        %v441 = vpop.xlane.xlu0 %440
        %v442 = vsel %vm411, %v432, 0.0
        %443 = vadd.xlane.f32.xlu0 %v442
        %v444 = vpop.xlane.xlu0 %443
        %v445 = vmul.f32 %v435, %v424
        %v446 = vmul.f32 %v438, %v424
        %v447 = vmul.f32 %v441, %v424
        %v448 = vmul.f32 %v444, %v424
        %v449 = vmul.f32 %v425, %v425
        %v450 = vmul.f32 %v426, %v426
        %v451 = vmul.f32 %v427, %v427
        %v452 = vmul.f32 %v428, %v428
        %v453 = vsub.f32 %v445, %v449
        %v454 = vsub.f32 %v446, %v450
        %v455 = vsub.f32 %v447, %v451
        %v456 = vsub.f32 %v448, %v452
        %v457 = vmax.f32 %v453, 0.0
        %v458 = vmax.f32 %v454, 0.0
        %v459 = vmax.f32 %v455, 0.0
        %v460 = vmax.f32 %v456, 0.0
        %v461 = vsub.f32 %v407, %v425
        %v462 = vsub.f32 %v408, %v426
        %v463 = vsub.f32 %v409, %v427
        %v464 = vsub.f32 %v410, %v428
        %v465 = vadd.f32 %v457, 1e-12
        %v466 = vadd.f32 %v458, 1e-12
        %v467 = vadd.f32 %v459, 1e-12
        %v468 = vadd.f32 %v460, 1e-12
        %v469 = vrsqrt.pop %v465
        %v470 = vrsqrt.pop %v466
        %v471 = vrsqrt.pop %v467
        %v472 = vrsqrt.pop %v468
        %v473 = vmul.f32 %v461, %v469
        %v474 = vmul.f32 %v462, %v470
        %v475 = vmul.f32 %v463, %v471
        %v476 = vmul.f32 %v464, %v472
        %v477 = vld [vmem:[%s345] sm:$0x1]
        %v478 = vld [vmem:[%s345 + $0x1] sm:$0x1]
        %v479 = vld [vmem:[%s345 + $0x2] sm:$0x1]
        %v480 = vld [vmem:[%s345 + $0x3] sm:$0x1]
        %v485 = vlaneseq
        %v486 = vshrl.u32 %v485, 7
        %v487 = vsub.s32 0, %v486
        %v488 = vrot.slane %v477, %v487
        %v489 = vlaneseq
        %v490 = vshrl.u32 %v489, 7
        %v491 = vsub.s32 0, %v490
        %v492 = vrot.slane %v478, %v491
        %v493 = vlaneseq
        %v494 = vshrl.u32 %v493, 7
        %v495 = vsub.s32 0, %v494
        %v496 = vrot.slane %v479, %v495
        %v497 = vlaneseq
        %v498 = vshrl.u32 %v497, 7
        %v499 = vsub.s32 0, %v498
        %v500 = vrot.slane %v480, %v499
        %v505 = vmul.f32 %v473, %v488
        %v506 = vmul.f32 %v474, %v492
        %v507 = vmul.f32 %v475, %v496
        %v508 = vmul.f32 %v476, %v500
        %v509 = vld [vmem:[%s354] sm:$0x1]
        %v510 = vld [vmem:[%s354 + $0x1] sm:$0x1]
        %v511 = vld [vmem:[%s354 + $0x2] sm:$0x1]
        %v512 = vld [vmem:[%s354 + $0x3] sm:$0x1]
        %v517 = vlaneseq
        %v518 = vshrl.u32 %v517, 7
        %v519 = vsub.s32 0, %v518
        %v520 = vrot.slane %v509, %v519
        %v521 = vlaneseq
        %v522 = vshrl.u32 %v521, 7
        %v523 = vsub.s32 0, %v522
        %v524 = vrot.slane %v510, %v523
        %v525 = vlaneseq
        %v526 = vshrl.u32 %v525, 7
        %v527 = vsub.s32 0, %v526
        %v528 = vrot.slane %v511, %v527
        %v529 = vlaneseq
        %v530 = vshrl.u32 %v529, 7
        %v531 = vsub.s32 0, %v530
        %v532 = vrot.slane %v512, %v531
        %v537 = vadd.f32 %v505, %v520
        %v538 = vadd.f32 %v506, %v524
        %v539 = vadd.f32 %v507, %v528
        %v540 = vadd.f32 %v508, %v532
        %v541 = vld [vmem:[#allocation8] sm:$0xff]
        %v542 = vld [vmem:[#allocation8 + $0x8] sm:$0xff]
        %v543 = vld [vmem:[#allocation8 + $0x10] sm:$0xff]
        %v544 = vld [vmem:[#allocation8 + $0x18] sm:$0xff]
        %v545 = vld [vmem:[%s4] sm:$0x1]
        %v547 = vlaneseq
        %v548 = vshrl.u32 %v547, 7
        %v549 = vsub.s32 0, %v548
        %v550 = vrot.slane %v545, %v549
        %v553 = vsel %vm411, %v537, 0
        %v556 = vsel %vm411, %v538, 0
        %v559 = vsel %vm411, %v539, 0
        %v562 = vsel %vm411, %v540, 0
        %564 = vmatprep.subr.mxu0 0.0
        %565 = vmatpush1.msra.mxu0 %v541
        %566 = vmatprep.subr.mxu0 0.0
        %567 = vmatpush1.msra.mxu0 %v542
        %568 = vmatprep.subr.mxu0 0.0
        %569 = vmatpush1.msra.mxu0 %v543
        %570 = vmatprep.subr.mxu0 0.0
        %571 = vmatpush1.msra.mxu0 %v544
        %572 = vmatprep.subr.mxu0 0.0
        %573 = vmatpush1.msra.mxu0 0.0
        %574 = vmatprep.subr.mxu0 0.0
        %575 = vmatpush1.msra.mxu0 0.0
        %576 = vmatprep.subr.mxu0 0.0
        %577 = vmatpush1.msra.mxu0 0.0
        %578 = vmatprep.subr.mxu0 0.0
        %579 = vmatpush1.msra.mxu0 0.0
        %580 = vmatprep.subr.mxu0 0.0
        %581 = vmatpush1.msra.mxu0 0.0
        %582 = vmatprep.subr.mxu0 0.0
        %583 = vmatpush1.msra.mxu0 0.0
        %584 = vmatprep.subr.mxu0 0.0
        %585 = vmatpush1.msra.mxu0 0.0
        %586 = vmatprep.subr.mxu0 0.0
        %587 = vmatpush1.msra.mxu0 0.0
        %588 = vmatprep.subr.mxu0 0.0
        %589 = vmatpush1.msra.mxu0 0.0
        %590 = vmatprep.subr.mxu0 0.0
        %591 = vmatpush1.msra.mxu0 0.0
        %592 = vmatprep.subr.mxu0 0.0
        %593 = vmatpush1.msra.mxu0 0.0
        %594 = vmatprep.subr.mxu0 0.0
        %595 = vmatpush1.msra.mxu0 0.0
        %596 = vmatprep.subr.mxu0 0.0
        %597 = vmatpush1.msra.mxu0 0.0
        %598 = vmatprep.subr.mxu0 0.0
        %599 = vmatpush1.msra.mxu0 0.0
        %600 = vmatprep.subr.mxu0 0.0
        %601 = vmatpush1.msra.mxu0 0.0
        %602 = vmatprep.subr.mxu0 0.0
        %603 = vmatpush1.msra.mxu0 0.0
        %604 = vmatprep.subr.mxu0 0.0
        %605 = vmatpush1.msra.mxu0 0.0
        %606 = vmatprep.subr.mxu0 0.0
        %607 = vmatpush1.msra.mxu0 0.0
        %608 = vmatprep.subr.mxu0 0.0
        %609 = vmatpush1.msra.mxu0 0.0
        %610 = vmatprep.subr.mxu0 0.0
        %611 = vmatpush1.msra.mxu0 0.0
        %612 = vmatprep.subr.mxu0 0.0
        %613 = vmatpush1.msra.mxu0 0.0
        %614 = vmatprep.subr.mxu0 0.0
        %615 = vmatpush1.msra.mxu0 0.0
        %616 = vmatprep.subr.mxu0 0.0
        %617 = vmatpush1.msra.mxu0 0.0
        %618 = vmatprep.subr.mxu0 0.0
        %619 = vmatpush1.msra.mxu0 0.0
        %620 = vmatprep.subr.mxu0 0.0
        %621 = vmatpush1.msra.mxu0 0.0
        %622 = vmatprep.subr.mxu0 0.0
        %623 = vmatpush1.msra.mxu0 0.0
        %624 = vmatprep.subr.mxu0 0.0
        %625 = vmatpush1.msra.mxu0 0.0
        %626 = vmatprep.subr.mxu0 0.0
        %627 = vmatpush1.msra.mxu0 0.0
        %628 = vmatprep.mubr.f32.mxu0 0.0
        %629 = vmatmul.mubr.f32.gmra.mrb[0].mxu0 %v553
        %v630 = vpop.f32.mrb[0].mxu0
        %v631 = vadd.f32 %v550, %v630
        %v632 = vpop.f32.mrb[0].mxu0
        %633 = vmatprep.mubr.f32.mxu0 0.0
        %634 = vmatmul.mubr.f32.gmra.mrb[0].mxu0 %v556
        %v635 = vpop.f32.mrb[0].mxu0
        %v636 = vadd.f32 %v550, %v635
        %v637 = vpop.f32.mrb[0].mxu0
        %638 = vmatprep.mubr.f32.mxu0 0.0
        %639 = vmatmul.mubr.f32.gmra.mrb[0].mxu0 %v559
        %v640 = vpop.f32.mrb[0].mxu0
        %v641 = vadd.f32 %v550, %v640
        %v642 = vpop.f32.mrb[0].mxu0
        %643 = vmatprep.mubr.f32.mxu0 0.0
        %644 = vmatmul.mubr.f32.gmra.mrb[0].mxu0 %v562
        %v645 = vpop.f32.mrb[0].mxu0
        %v646 = vadd.f32 %v550, %v645
        %v647 = vpop.f32.mrb[0].mxu0
        %648 = vdwg.mxu0
        %v649 = vmax.f32 %v631, 0.0
        %v650 = vmax.f32 %v636, 0.0
        %v651 = vmax.f32 %v641, 0.0
        %v652 = vmax.f32 %v646, 0.0
        %v653 = vld [vmem:[#allocation10] sm:$0xff]
        %v654 = vld [vmem:[#allocation10 + $0x8] sm:$0xff]
        %v655 = vld [vmem:[#allocation10 + $0x10] sm:$0xff]
        %v656 = vld [vmem:[#allocation10 + $0x18] sm:$0xff]
        %v657 = vld [vmem:[#allocation10 + $0x20] sm:$0xff]
        %v658 = vld [vmem:[#allocation10 + $0x28] sm:$0xff]
        %v659 = vld [vmem:[#allocation10 + $0x30] sm:$0xff]
        %v660 = vld [vmem:[#allocation10 + $0x38] sm:$0xff]
        %v661 = vld [vmem:[#allocation10 + $0x40] sm:$0xff]
        %v662 = vld [vmem:[#allocation10 + $0x48] sm:$0xff]
        %v663 = vld [vmem:[#allocation10 + $0x50] sm:$0xff]
        %v664 = vld [vmem:[#allocation10 + $0x58] sm:$0xff]
        %v665 = vld [vmem:[#allocation10 + $0x60] sm:$0xff]
        %v666 = vld [vmem:[#allocation10 + $0x68] sm:$0xff]
        %v667 = vld [vmem:[#allocation10 + $0x70] sm:$0xff]
        %v668 = vld [vmem:[#allocation10 + $0x78] sm:$0xff]
        %v669 = vld [vmem:[%s6] sm:$0x1]
        %v671 = vlaneseq
        %v672 = vshrl.u32 %v671, 7
        %v673 = vsub.s32 0, %v672
        %v674 = vrot.slane %v669, %v673
        %676 = vmatprep.subr.mxu0 0.0
        %677 = vmatpush1.msra.mxu0 %v653
        %678 = vmatprep.subr.mxu0 0.0
        %679 = vmatpush1.msra.mxu0 %v654
        %680 = vmatprep.subr.mxu0 0.0
        %681 = vmatpush1.msra.mxu0 %v655
        %682 = vmatprep.subr.mxu0 0.0
        %683 = vmatpush1.msra.mxu0 %v656
        %684 = vmatprep.subr.mxu0 0.0
        %685 = vmatpush1.msra.mxu0 %v657
        %686 = vmatprep.subr.mxu0 0.0
        %687 = vmatpush1.msra.mxu0 %v658
        %688 = vmatprep.subr.mxu0 0.0
        %689 = vmatpush1.msra.mxu0 %v659
        %690 = vmatprep.subr.mxu0 0.0
        %691 = vmatpush1.msra.mxu0 %v660
        %692 = vmatprep.subr.mxu0 0.0
        %693 = vmatpush1.msra.mxu0 %v661
        %694 = vmatprep.subr.mxu0 0.0
        %695 = vmatpush1.msra.mxu0 %v662
        %696 = vmatprep.subr.mxu0 0.0
        %697 = vmatpush1.msra.mxu0 %v663
        %698 = vmatprep.subr.mxu0 0.0
        %699 = vmatpush1.msra.mxu0 %v664
        %700 = vmatprep.subr.mxu0 0.0
        %701 = vmatpush1.msra.mxu0 %v665
        %702 = vmatprep.subr.mxu0 0.0
        %703 = vmatpush1.msra.mxu0 %v666
        %704 = vmatprep.subr.mxu0 0.0
        %705 = vmatpush1.msra.mxu0 %v667
        %706 = vmatprep.subr.mxu0 0.0
        %707 = vmatpush1.msra.mxu0 %v668
        %708 = vmatprep.subr.mxu0 0.0
        %709 = vmatpush1.msra.mxu0 0.0
        %710 = vmatprep.subr.mxu0 0.0
        %711 = vmatpush1.msra.mxu0 0.0
        %712 = vmatprep.subr.mxu0 0.0
        %713 = vmatpush1.msra.mxu0 0.0
        %714 = vmatprep.subr.mxu0 0.0
        %715 = vmatpush1.msra.mxu0 0.0
        %716 = vmatprep.subr.mxu0 0.0
        %717 = vmatpush1.msra.mxu0 0.0
        %718 = vmatprep.subr.mxu0 0.0
        %719 = vmatpush1.msra.mxu0 0.0
        %720 = vmatprep.subr.mxu0 0.0
        %721 = vmatpush1.msra.mxu0 0.0
        %722 = vmatprep.subr.mxu0 0.0
        %723 = vmatpush1.msra.mxu0 0.0
        %724 = vmatprep.subr.mxu0 0.0
        %725 = vmatpush1.msra.mxu0 0.0
        %726 = vmatprep.subr.mxu0 0.0
        %727 = vmatpush1.msra.mxu0 0.0
        %728 = vmatprep.subr.mxu0 0.0
        %729 = vmatpush1.msra.mxu0 0.0
        %730 = vmatprep.subr.mxu0 0.0
        %731 = vmatpush1.msra.mxu0 0.0
        %732 = vmatprep.subr.mxu0 0.0
        %733 = vmatpush1.msra.mxu0 0.0
        %734 = vmatprep.subr.mxu0 0.0
        %735 = vmatpush1.msra.mxu0 0.0
        %736 = vmatprep.subr.mxu0 0.0
        %737 = vmatpush1.msra.mxu0 0.0
        %738 = vmatprep.subr.mxu0 0.0
        %739 = vmatpush1.msra.mxu0 0.0
        %740 = vmatprep.mubr.f32.mxu0 0.0
        %741 = vmatmul.mubr.f32.gmra.mrb[0].mxu0 %v649
        %v742 = vpop.f32.mrb[0].mxu0
        %v743 = vadd.f32 %v674, %v742
        %v744 = vpop.f32.mrb[0].mxu0
        %745 = vmatprep.mubr.f32.mxu0 0.0
        %746 = vmatmul.mubr.f32.gmra.mrb[0].mxu0 %v650
        %v747 = vpop.f32.mrb[0].mxu0
        %v748 = vadd.f32 %v674, %v747
        %v749 = vpop.f32.mrb[0].mxu0
        %750 = vmatprep.mubr.f32.mxu0 0.0
        %751 = vmatmul.mubr.f32.gmra.mrb[0].mxu0 %v651
        %v752 = vpop.f32.mrb[0].mxu0
        %v753 = vadd.f32 %v674, %v752
        %v754 = vpop.f32.mrb[0].mxu0
        %755 = vmatprep.mubr.f32.mxu0 0.0
        %756 = vmatmul.mubr.f32.gmra.mrb[0].mxu0 %v652
        %v757 = vpop.f32.mrb[0].mxu0
        %v758 = vadd.f32 %v674, %v757
        %v759 = vpop.f32.mrb[0].mxu0
        %760 = vdwg.mxu0
        %761 = vst [vmem:[%s402] sm:$0xff] %v743
        %762 = vst [vmem:[%s402 + $0x8] sm:$0xff] %v748
        %763 = vst [vmem:[%s402 + $0x10] sm:$0xff] %v753
        %764 = vst [vmem:[%s402 + $0x18] sm:$0xff] %v758
        %s765 = sand.u32 %s198, 1
        %s766 = scalar_lea.sflag [#allocation4], %s765
        %s767 = sand.u32 %s198, 1
        %s768 = smul.addr %s767, 32
        %s769 = scalar_lea.vmem [#allocation11], %s768
        // Predicated region
        $region69: #{tpu_custom_call.1} parent=47 // pred_check
          %p770 = pneg %p208
        $region70: #{tpu_custom_call.1} parent=47 // pred_check_branch
          %772 = sbr.rel (%p770) target = $region72
        $region71: #{tpu_custom_call.1} parent=47 // pred_region
          %s773 = smul.u32 4, %s28
          %s775 = ssub.s32 512, 512
          %776 = vsyncadd %s766, %s775
          %s777 = smul.addr %s773, 128
          %s778 = scalar_lea.hbm %s7, %s777
          %s779 = sshll.u32 %s769, 4
          %s780 = int_to_ptr.vmem [resolvable:$true] %s779
          %785 = dma.vmem_to_hbm [thread:$0]  %s780, 512, %s778, %s766, 128, 128, 8
        $region72: #{tpu_custom_call.1} parent=47 // pred_fallthru
          _
      $region48: #{tpu_custom_call.1} parent=5 // pred_fallthru
        _
      %p786 = scmp.le.s32.totalorder 2, %s23
      // Predicated region
      $region73: #{tpu_custom_call.1} parent=5 // pred_check
        %p787 = pneg %p786
      $region74: #{tpu_custom_call.1} parent=5 // pred_check_branch
        %789 = sbr.rel (%p787) target = $region76
      $region75: #{tpu_custom_call.1} parent=5 // pred_region
        %s790 = ssub.s32 %s23, 2
        // Predicated region
        $region77: #{tpu_custom_call.1} parent=75 // pred_check
          %p791 = pneg %p214
        $region78: #{tpu_custom_call.1} parent=75 // pred_check_branch
          %793 = sbr.rel (%p791) target = $region80
        $region79: #{tpu_custom_call.1} parent=75 // pred_region
          %s794 = sand.u32 %s199, 1
          %s795 = scalar_lea.sflag [#allocation4], %s794
          %s796 = sand.u32 %s199, 1
          %s797 = smul.addr %s796, 32
          %s798 = scalar_lea.vmem [#allocation11], %s797
          %799 = dma.done %s795, 512
        $region80: #{tpu_custom_call.1} parent=75 // pred_fallthru
          _
      $region76: #{tpu_custom_call.1} parent=5 // pred_fallthru
        _
    $region6: #{tpu_custom_call.1} parent=1 // loop_footer
      %s27 = sadd.s32 1, %s23
    $region7: #{tpu_custom_call.1} parent=1 // loop_footer_branch
      %22 = sbr.rel target = $region3
    $region8: #{tpu_custom_call.1} parent=1 // loop_exit
      _
    %800 = vsyncpa [#allocation3], 1
    %s801 = scalar_lea.sflag [#allocation3], 1
    %802 = vsyncpa %s801, 1
    %803 = vsyncpa [#allocation6], 1
    %s804 = scalar_lea.sflag [#allocation6], 1
    %805 = vsyncpa %s804, 1
    %806 = vsyncpa [#allocation9], 1
    %807 = vsyncpa [#allocation4], 1
    %s808 = scalar_lea.sflag [#allocation4], 1
    %809 = vsyncpa %s808, 1

</llo_original>
